<compile_context>
chip_gen: v7x
topology: tpu7x:2x2x1
jax: 0.10.0
libtpu: 0.0.40
codegen_flags: <defaults>
</compile_context>

<pallas_src>
import jax
import jax.numpy as jnp
from jax.experimental import pallas as pl
from jax.experimental.pallas import tpu as pltpu


def hashgnn_kernel(x_ref, w_ref, b_ref, out_ref):
    """One batch tile of the eval-mode hashGNN forward.

    x_ref  : (TILE_B, 2D) bf16  -- [u_emb | i_emb] concatenated along features
    w_ref  : (2D, 2D)     bf16  -- block_diag(W_u, W_i), stored (in, out) for x @ W
    b_ref  : (1, 2D)      f32   -- [b_u | b_i]
    out_ref: (1, 1, TILE_B) f32 -- matching scores, lane-dense (batch on lanes)
    """
    two_d = w_ref.shape[0]
    d = two_d // 2

    # Fused projection of both towers: single MXU pass, bf16 in / f32 accumulate.
    z = jnp.dot(x_ref[...], w_ref[...], preferred_element_type=jnp.float32)
    z = z + b_ref[...]                              # (TILE_B, 2D) f32

    # Tanh removed: sign(tanh(z)) == sign(z); my_sign maps z >= 0 -> +1, z < 0 -> -1.
    # Transpose so batch lands on the 128-lane axis: the u/i half split becomes a
    # free sublane slice and the final store is an unmasked lane-dense row.
    zt = z.T                                        # (2D, TILE_B), XLU transpose
    neg_u = zt[:d, :] < 0.0                         # (D, TILE_B)
    neg_i = zt[d:, :] < 0.0

    # matching = sum(h_u * h_i) = D - 2 * #(sign mismatches)
    mismatch = (neg_u != neg_i).astype(jnp.float32)
    counts = jnp.sum(mismatch, axis=0, keepdims=True)       # (1, TILE_B)
    out_ref[...] = (jnp.float32(d) - 2.0 * counts)[None]    # (1, 1, TILE_B)


def hashgnn_forward(x_cat, w_bd, b_cat, *, tile_b=None):
    """x_cat: (B, 2D) bf16 = [u_emb | i_emb]; w_bd: (2D, 2D) bf16 block-diag;
    b_cat: (1, 2D) f32.  Returns matching: (B,) f32."""
    B, two_d = x_cat.shape
    if tile_b is None:
        # >=128 for lane-dense output; cap so even on v7x (64 MiB VMEM) the
        # double-buffered input tiles stay tiny (2048*2D*2B*2buf << 1 MiB at D=32).
        tile_b = int(min(2048, max(128, pl.next_power_of_2(B))))
    b_pad = pl.cdiv(B, tile_b) * tile_b
    if b_pad != B:
        x_cat = jnp.pad(x_cat, ((0, b_pad - B), (0, 0)))
    num_tiles = b_pad // tile_b

    out = pl.pallas_call(
        hashgnn_kernel,
        out_shape=jax.ShapeDtypeStruct((num_tiles, 1, tile_b), jnp.float32),
        grid=(num_tiles,),
        in_specs=[
            pl.BlockSpec((tile_b, two_d), lambda b: (b, 0)),   # batch-tiled input
            pl.BlockSpec((two_d, two_d), lambda b: (0, 0)),    # VMEM-resident weights
            pl.BlockSpec((1, two_d), lambda b: (0, 0)),        # VMEM-resident bias
        ],
        out_specs=pl.BlockSpec((1, 1, tile_b), lambda b: (b, 0, 0)),
        compiler_params=pltpu.CompilerParams(
            dimension_semantics=("parallel",)),                # v7x: shard across TCs
    )(x_cat, w_bd, b_cat)
    return out.reshape(b_pad)[:B]


if __name__ == "__main__":
    # Small synthetic configuration consistent with the module:
    #   embedding_size = 32, num_users = num_items = 16, batch = 8
    D = 32
    NUM_USERS = 16
    NUM_ITEMS = 16
    B = 8

    key = jax.random.PRNGKey(0)
    k_ut, k_it, k_wu, k_bu, k_wi, k_bi, k_u, k_i = jax.random.split(key, 8)

    # MatrixFactorization embedding tables (deterministic init)
    user_table = jax.random.normal(k_ut, (NUM_USERS, D), dtype=jnp.float32) * 0.1
    item_table = jax.random.normal(k_it, (NUM_ITEMS, D), dtype=jnp.float32) * 0.1

    # nn.Linear(D, D) parameters; stored pre-transposed as (in, out) for x @ W
    w_u = jax.random.normal(k_wu, (D, D), dtype=jnp.float32) * 0.1
    b_u = jax.random.normal(k_bu, (1, D), dtype=jnp.float32) * 0.1
    w_i = jax.random.normal(k_wi, (D, D), dtype=jnp.float32) * 0.1
    b_i = jax.random.normal(k_bi, (1, D), dtype=jnp.float32) * 0.1

    # Batch of user / item indices
    user_idx = jax.random.randint(k_u, (B,), 0, NUM_USERS)
    item_idx = jax.random.randint(k_i, (B,), 0, NUM_ITEMS)

    # Embedding lookups (rec_model.user_encoder / item_encoder) -- XLA glue;
    # gather + concat + bf16 cast fuse into one pass producing the kernel input.
    u_emb = user_table[user_idx]                               # (B, D)
    i_emb = item_table[item_idx]                               # (B, D)
    x_cat = jnp.concatenate([u_emb, i_emb], axis=-1).astype(jnp.bfloat16)  # (B, 2D)

    # Fused (block-diagonal) projection weights / concatenated bias.
    zeros = jnp.zeros((D, D), jnp.float32)
    w_bd = jnp.block([[w_u, zeros], [zeros, w_i]]).astype(jnp.bfloat16)    # (2D, 2D)
    b_cat = jnp.concatenate([b_u, b_i], axis=-1)                           # (1, 2D) f32

    matching = hashgnn_forward(x_cat, w_bd, b_cat)
    matching = jax.block_until_ready(matching)

    # Reference in plain JAX mirroring the kernel numerics (bf16 matmul inputs,
    # f32 accumulation).  Tanh kept here for faithfulness to the module; it
    # cannot change any sign, so the result is identical to the kernel's math.
    z_ref = jnp.tanh(
        jnp.dot(x_cat, w_bd, preferred_element_type=jnp.float32) + b_cat)
    h_u_ref = jnp.where(z_ref[:, :D] < 0.0, -1.0, 1.0)
    h_i_ref = jnp.where(z_ref[:, D:] < 0.0, -1.0, 1.0)
    ref = jnp.sum(h_u_ref * h_i_ref, axis=-1)

    assert matching.shape == (B,)
    assert jnp.allclose(matching, ref, atol=1e-5), (matching, ref)

    print("KERNEL_OK")
</pallas_src>

<mosaic_0001>
module attributes {stable_mosaic.version = 11 : i64} {
  func.func @hashgnn_kernel(%arg0: i32, %arg1: memref<128x64xbf16, #tpu.memory_space<vmem>>, %arg2: memref<64x64xbf16, #tpu.memory_space<vmem>>, %arg3: memref<1x64xf32, #tpu.memory_space<vmem>>, %arg4: memref<1x1x128xf32, #tpu.memory_space<vmem>>) attributes {dimension_semantics = [#tpu.dimension_semantics<parallel>], iteration_bounds = array<i64: 1>, scalar_prefetch = 0 : i64, scratch_operands = 0 : i64, tpu.core_type = #tpu.core_type<tc>, window_params = [{transform_indices = @transform_0, window_bounds = array<i64: 128, 64>}, {pipeline_mode = #tpu.pipeline_mode<synchronous>, transform_indices = @transform_1, window_bounds = array<i64: 64, 64>}, {pipeline_mode = #tpu.pipeline_mode<synchronous>, transform_indices = @transform_2, window_bounds = array<i64: 1, 64>}, {transform_indices = @transform_3, window_bounds = array<i64: 1, 1, 128>}]} {
    %c0 = arith.constant 0 : index
    %c0_0 = arith.constant 0 : index
    %0 = vector.load %arg1[%c0, %c0_0] : memref<128x64xbf16, #tpu.memory_space<vmem>>, vector<128x64xbf16>
    %c0_1 = arith.constant 0 : index
    %c0_2 = arith.constant 0 : index
    %1 = vector.load %arg2[%c0_1, %c0_2] : memref<64x64xbf16, #tpu.memory_space<vmem>>, vector<64x64xbf16>
    %cst = arith.constant dense<0.000000e+00> : vector<128x64xf32>
    %2 = tpu.matmul %0, %1, %cst {dimension_numbers = #tpu.dot_dimension_numbers<[1], [0], [0], [1], [0, 0, 1, 1], [], []>} : vector<128x64xbf16>, vector<64x64xbf16>, vector<128x64xf32> -> vector<128x64xf32>
    %c0_3 = arith.constant 0 : index
    %c0_4 = arith.constant 0 : index
    %3 = vector.load %arg3[%c0_3, %c0_4] : memref<1x64xf32, #tpu.memory_space<vmem>>, vector<1x64xf32>
    %4 = vector.broadcast %3 : vector<1x64xf32> to vector<128x64xf32>
    %5 = arith.addf %2, %4 : vector<128x64xf32>
    %6 = tpu.transpose %5, [1, 0] : vector<128x64xf32> -> vector<64x128xf32>
    %7 = vector.extract_strided_slice %6 {offsets = [0, 0], sizes = [32, 128], strides = [1, 1]} : vector<64x128xf32> to vector<32x128xf32>
    %cst_5 = arith.constant 0.000000e+00 : f32
    %8 = vector.broadcast %cst_5 : f32 to vector<32x128xf32>
    %9 = arith.cmpf olt, %7, %8 : vector<32x128xf32>
    %10 = vector.extract_strided_slice %6 {offsets = [32, 0], sizes = [32, 128], strides = [1, 1]} : vector<64x128xf32> to vector<32x128xf32>
    %cst_6 = arith.constant 0.000000e+00 : f32
    %11 = vector.broadcast %cst_6 : f32 to vector<32x128xf32>
    %12 = arith.cmpf olt, %10, %11 : vector<32x128xf32>
    %13 = arith.xori %9, %12 : vector<32x128xi1>
    %14 = arith.extui %13 : vector<32x128xi1> to vector<32x128xi32>
    %15 = arith.sitofp %14 : vector<32x128xi32> to vector<32x128xf32>
    %cst_7 = arith.constant dense<0.000000e+00> : vector<128xf32>
    %16 = vector.multi_reduction <add>, %15, %cst_7 [0] : vector<32x128xf32> to vector<128xf32>
    %17 = vector.shape_cast %16 : vector<128xf32> to vector<1x128xf32>
    %cst_8 = arith.constant 2.000000e+00 : f32
    %18 = vector.broadcast %cst_8 : f32 to vector<1x128xf32>
    %19 = arith.mulf %18, %17 : vector<1x128xf32>
    %cst_9 = arith.constant 3.200000e+01 : f32
    %20 = vector.broadcast %cst_9 : f32 to vector<1x128xf32>
    %21 = arith.subf %20, %19 : vector<1x128xf32>
    %22 = vector.shape_cast %21 : vector<1x128xf32> to vector<1x1x128xf32>
    %c0_10 = arith.constant 0 : index
    %c0_11 = arith.constant 0 : index
    %c0_12 = arith.constant 0 : index
    %23 = vector.load %arg4[%c0_10, %c0_11, %c0_12] : memref<1x1x128xf32, #tpu.memory_space<vmem>>, vector<1x1x128xf32>
    tpu.vector_store %arg4[%c0_10, %c0_11, %c0_12], %22 {strides = array<i32>} : memref<1x1x128xf32, #tpu.memory_space<vmem>>, vector<1x1x128xf32>,
    return
  }
  func.func @transform_0(%arg0: i32) -> (i32, i32) {
    %c0_i32 = arith.constant 0 : i32
    %c0_i32_0 = arith.constant 0 : i32
    return %arg0, %c0_i32 : i32, i32
  }
  func.func @transform_1(%arg0: i32) -> (i32, i32) {
    %c0_i32 = arith.constant 0 : i32
    %c0_i32_0 = arith.constant 0 : i32
    %c0_i32_1 = arith.constant 0 : i32
    return %c0_i32, %c0_i32_0 : i32, i32
  }
  func.func @transform_2(%arg0: i32) -> (i32, i32) {
    %c0_i32 = arith.constant 0 : i32
    %c0_i32_0 = arith.constant 0 : i32
    %c0_i32_1 = arith.constant 0 : i32
    return %c0_i32, %c0_i32_0 : i32, i32
  }
  func.func @transform_3(%arg0: i32) -> (i32, i32, i32) {
    %c0_i32 = arith.constant 0 : i32
    %c0_i32_0 = arith.constant 0 : i32
    %c0_i32_1 = arith.constant 0 : i32
    return %arg0, %c0_i32, %c0_i32_0 : i32, i32, i32
  }
}

</mosaic_0001>

<llo_original>
// kernel: tpu_custom_call.1
$region0: #{tpu_custom_call.1}
  #allocation0 [shape = 'u32[]', space=smem, size = 0x4, offset = 0x4, fixed_abs, tag = 'smem constant byte address 0x4 - core index']
  #allocation1 [shape = 'u32[144,128]{1,0:T(1,128)}', space=vmem, size = 0x12000, scoped, tag = 'internal scratch']
  %s0 = inlined_call_operand.vmem [shape: bf16[128,64], index: 0, kind: input, shape index: {}]
  %s1 = inlined_call_operand.vmem [shape: bf16[64,64], index: 1, kind: input, shape index: {}]
  %s2 = inlined_call_operand.vmem [shape: f32[1,64], index: 2, kind: input, shape index: {}]
  %s3 = inlined_call_operand.hbm [shape: f32[1,1,128], index: 3, kind: output, shape index: {}]
  %s4 = sld [smem:[#allocation0]]
  $region22: #{tpu_custom_call.1} parent=0
    _
  %s6 = ssub.s32 1, %s4
  %s7 = scalar_select 0, %s6, %s4
  $region1: #{tpu_custom_call.1} parent=0
    #allocation2 [shape = 'u8[512]{0}', space=vmem, size = 0x400, scoped, tag = 'output window, operand 0, single buffered']
    #allocation3 [shape = 's32[1]{0}', space=sflag, size = 0x4, scoped, tag = 'scoped memory for tpu_custom_call.1']
    %8 = vsyncpa [#allocation3], 0
    // Predicated region
    $region2: #{tpu_custom_call.1} parent=1 // pred_check
      _
    $region3: #{tpu_custom_call.1} parent=1 // pred_check_branch
      %10 = sbr.rel (0) target = $region5
    $region4: #{tpu_custom_call.1} parent=1 // pred_region
      _
    $region5: #{tpu_custom_call.1} parent=1 // pred_fallthru
      _
    // Predicated region
    $region6: #{tpu_custom_call.1} parent=1 // pred_check
      _
    $region7: #{tpu_custom_call.1} parent=1 // pred_check_branch
      %12 = sbr.rel (0) target = $region9
    $region8: #{tpu_custom_call.1} parent=1 // pred_region
      _
    $region9: #{tpu_custom_call.1} parent=1 // pred_fallthru
      _
    // Predicated region
    $region10: #{tpu_custom_call.1} parent=1 // pred_check
      _
    $region11: #{tpu_custom_call.1} parent=1 // pred_check_branch
      %14 = sbr.rel (0) target = $region13
    $region12: #{tpu_custom_call.1} parent=1 // pred_region
      _
    $region13: #{tpu_custom_call.1} parent=1 // pred_fallthru
      _
    %v16 = vld [vmem:[%s0] sm:$0xf]
    %v17 = vld [vmem:[%s0 + $0x4] sm:$0xf]
    %v18 = vld [vmem:[%s0 + $0x8] sm:$0xf]
    %v19 = vld [vmem:[%s0 + $0xc] sm:$0xf]
    %v20 = vld [vmem:[%s0 + $0x10] sm:$0xf]
    %v21 = vld [vmem:[%s0 + $0x14] sm:$0xf]
    %v22 = vld [vmem:[%s0 + $0x18] sm:$0xf]
    %v23 = vld [vmem:[%s0 + $0x1c] sm:$0xf]
    %v24 = vld [vmem:[%s0 + $0x20] sm:$0xf]
    %v25 = vld [vmem:[%s0 + $0x24] sm:$0xf]
    %v26 = vld [vmem:[%s0 + $0x28] sm:$0xf]
    %v27 = vld [vmem:[%s0 + $0x2c] sm:$0xf]
    %v28 = vld [vmem:[%s0 + $0x30] sm:$0xf]
    %v29 = vld [vmem:[%s0 + $0x34] sm:$0xf]
    %v30 = vld [vmem:[%s0 + $0x38] sm:$0xf]
    %v31 = vld [vmem:[%s0 + $0x3c] sm:$0xf]
    %v32 = vld [vmem:[%s1] sm:$0xf]
    %v33 = vld [vmem:[%s1 + $0x4] sm:$0xf]
    %v34 = vld [vmem:[%s1 + $0x8] sm:$0xf]
    %v35 = vld [vmem:[%s1 + $0xc] sm:$0xf]
    %v36 = vld [vmem:[%s1 + $0x10] sm:$0xf]
    %v37 = vld [vmem:[%s1 + $0x14] sm:$0xf]
    %v38 = vld [vmem:[%s1 + $0x18] sm:$0xf]
    %v39 = vld [vmem:[%s1 + $0x1c] sm:$0xf]
    %v40 = vld [vmem:[%s2] sm:$0x1]
    %v42 = vlaneseq
    %v43 = vshrl.u32 %v42, 7
    %v44 = vsub.s32 0, %v43
    %v45 = vrot.slane %v40, %v44
    %v63 = vunpack.c.l.b16 %v16
    %v64 = vunpack.c.l.b16 %v17
    %v65 = vunpack.c.l.b16 %v18
    %v66 = vunpack.c.l.b16 %v19
    %v67 = vunpack.c.l.b16 %v20
    %v68 = vunpack.c.l.b16 %v21
    %v69 = vunpack.c.l.b16 %v22
    %v70 = vunpack.c.l.b16 %v23
    %v71 = vunpack.c.l.b16 %v24
    %v72 = vunpack.c.l.b16 %v25
    %v73 = vunpack.c.l.b16 %v26
    %v74 = vunpack.c.l.b16 %v27
    %v75 = vunpack.c.l.b16 %v28
    %v76 = vunpack.c.l.b16 %v29
    %v77 = vunpack.c.l.b16 %v30
    %v78 = vunpack.c.l.b16 %v31
    %v79 = vpack.c.b16 %v64, %v63
    %v80 = vpack.c.b16 %v66, %v65
    %v81 = vpack.c.b16 %v68, %v67
    %v82 = vpack.c.b16 %v70, %v69
    %v83 = vpack.c.b16 %v72, %v71
    %v84 = vpack.c.b16 %v74, %v73
    %v85 = vpack.c.b16 %v76, %v75
    %v86 = vpack.c.b16 %v78, %v77
    %v95 = vunpack.c.l.b16 %v32
    %v96 = vunpack.c.l.b16 %v33
    %v97 = vunpack.c.l.b16 %v34
    %v98 = vunpack.c.l.b16 %v35
    %v99 = vunpack.c.l.b16 %v36
    %v100 = vunpack.c.l.b16 %v37
    %v101 = vunpack.c.l.b16 %v38
    %v102 = vunpack.c.l.b16 %v39
    %v103 = vpack.c.b16 %v96, %v95
    %v104 = vpack.c.b16 %v98, %v97
    %v105 = vpack.c.b16 %v100, %v99
    %v106 = vpack.c.b16 %v102, %v101
    %vm111 = vcmask 523264
    %v113 = vsel %vm111, %v79, 0
    %v116 = vsel %vm111, %v80, 0
    %v119 = vsel %vm111, %v81, 0
    %v122 = vsel %vm111, %v82, 0
    %v125 = vsel %vm111, %v83, 0
    %v128 = vsel %vm111, %v84, 0
    %v131 = vsel %vm111, %v85, 0
    %v134 = vsel %vm111, %v86, 0
    %136 = vmatprep.subr.bf16.mxu0 0
    %137 = vmatpush1.bf16.msra.mxu0 %v103
    %138 = vmatprep.subr.bf16.mxu0 0
    %139 = vmatpush1.bf16.msra.mxu0 %v104
    %140 = vmatprep.subr.bf16.mxu0 0
    %141 = vmatpush1.bf16.msra.mxu0 %v105
    %142 = vmatprep.subr.bf16.mxu0 0
    %143 = vmatpush1.bf16.msra.mxu0 %v106
    %144 = vmatprep.subr.bf16.mxu0 0
    %145 = vmatpush1.bf16.msra.mxu0 0
    %146 = vmatprep.subr.bf16.mxu0 0
    %147 = vmatpush1.bf16.msra.mxu0 0
    %148 = vmatprep.subr.bf16.mxu0 0
    %149 = vmatpush1.bf16.msra.mxu0 0
    %150 = vmatprep.subr.bf16.mxu0 0
    %151 = vmatpush1.bf16.msra.mxu0 0
    %152 = vmatprep.subr.bf16.mxu0 0
    %153 = vmatpush1.bf16.msra.mxu0 0
    %154 = vmatprep.subr.bf16.mxu0 0
    %155 = vmatpush1.bf16.msra.mxu0 0
    %156 = vmatprep.subr.bf16.mxu0 0
    %157 = vmatpush1.bf16.msra.mxu0 0
    %158 = vmatprep.subr.bf16.mxu0 0
    %159 = vmatpush1.bf16.msra.mxu0 0
    %160 = vmatprep.subr.bf16.mxu0 0
    %161 = vmatpush1.bf16.msra.mxu0 0
    %162 = vmatprep.subr.bf16.mxu0 0
    %163 = vmatpush1.bf16.msra.mxu0 0
    %164 = vmatprep.subr.bf16.mxu0 0
    %165 = vmatpush1.bf16.msra.mxu0 0
    %166 = vmatprep.subr.bf16.mxu0 0
    %167 = vmatpush1.bf16.msra.mxu0 0
    %168 = vmatprep.mubr.bf16.mxu0 0
    %169 = vmatmul.mubr.bf16.gmra.mrb[0].mxu0 %v113
    %v170 = vpop.f32.mrb[0].mxu0
    %v171 = vadd.f32 %v45, %v170
    %v172 = vpop.f32.mrb[0].mxu0
    %v173 = vpop.f32.mrb[0].mxu0
    %v174 = vadd.f32 %v45, %v173
    %v175 = vpop.f32.mrb[0].mxu0
    %176 = vmatprep.mubr.bf16.mxu0 0
    %177 = vmatmul.mubr.bf16.gmra.mrb[0].mxu0 %v116
    %v178 = vpop.f32.mrb[0].mxu0
    %v179 = vadd.f32 %v45, %v178
    %v180 = vpop.f32.mrb[0].mxu0
    %v181 = vpop.f32.mrb[0].mxu0
    %v182 = vadd.f32 %v45, %v181
    %v183 = vpop.f32.mrb[0].mxu0
    %184 = vmatprep.mubr.bf16.mxu0 0
    %185 = vmatmul.mubr.bf16.gmra.mrb[0].mxu0 %v119
    %v186 = vpop.f32.mrb[0].mxu0
    %v187 = vadd.f32 %v45, %v186
    %v188 = vpop.f32.mrb[0].mxu0
    %v189 = vpop.f32.mrb[0].mxu0
    %v190 = vadd.f32 %v45, %v189
    %v191 = vpop.f32.mrb[0].mxu0
    %192 = vmatprep.mubr.bf16.mxu0 0
    %193 = vmatmul.mubr.bf16.gmra.mrb[0].mxu0 %v122
    %v194 = vpop.f32.mrb[0].mxu0
    %v195 = vadd.f32 %v45, %v194
    %v196 = vpop.f32.mrb[0].mxu0
    %v197 = vpop.f32.mrb[0].mxu0
    %v198 = vadd.f32 %v45, %v197
    %v199 = vpop.f32.mrb[0].mxu0
    %200 = vmatprep.mubr.bf16.mxu0 0
    %201 = vmatmul.mubr.bf16.gmra.mrb[0].mxu0 %v125
    %v202 = vpop.f32.mrb[0].mxu0
    %v203 = vadd.f32 %v45, %v202
    %v204 = vpop.f32.mrb[0].mxu0
    %v205 = vpop.f32.mrb[0].mxu0
    %v206 = vadd.f32 %v45, %v205
    %v207 = vpop.f32.mrb[0].mxu0
    %208 = vmatprep.mubr.bf16.mxu0 0
    %209 = vmatmul.mubr.bf16.gmra.mrb[0].mxu0 %v128
    %v210 = vpop.f32.mrb[0].mxu0
    %v211 = vadd.f32 %v45, %v210
    %v212 = vpop.f32.mrb[0].mxu0
    %v213 = vpop.f32.mrb[0].mxu0
    %v214 = vadd.f32 %v45, %v213
    %v215 = vpop.f32.mrb[0].mxu0
    %216 = vmatprep.mubr.bf16.mxu0 0
    %217 = vmatmul.mubr.bf16.gmra.mrb[0].mxu0 %v131
    %v218 = vpop.f32.mrb[0].mxu0
    %v219 = vadd.f32 %v45, %v218
    %v220 = vpop.f32.mrb[0].mxu0
    %v221 = vpop.f32.mrb[0].mxu0
    %v222 = vadd.f32 %v45, %v221
    %v223 = vpop.f32.mrb[0].mxu0
    %224 = vmatprep.mubr.bf16.mxu0 0
    %225 = vmatmul.mubr.bf16.gmra.mrb[0].mxu0 %v134
    %v226 = vpop.f32.mrb[0].mxu0
    %v227 = vadd.f32 %v45, %v226
    %v228 = vpop.f32.mrb[0].mxu0
    %v229 = vpop.f32.mrb[0].mxu0
    %v230 = vadd.f32 %v45, %v229
    %v231 = vpop.f32.mrb[0].mxu0
    %232 = vdwg.mxu0
    %233 = vxpose.xlu0.b32.start [1/16] %v171, 128
    %234 = vxpose.xlu0.b32.cont [2/16] %v174, 128
    %235 = vxpose.xlu0.b32.cont [3/16] %v179, 128
    %236 = vxpose.xlu0.b32.cont [4/16] %v182, 128
    %237 = vxpose.xlu0.b32.cont [5/16] %v187, 128
    %238 = vxpose.xlu0.b32.cont [6/16] %v190, 128
    %239 = vxpose.xlu0.b32.cont [7/16] %v195, 128
    %240 = vxpose.xlu0.b32.cont [8/16] %v198, 128
    %241 = vxpose.xlu0.b32.cont [9/16] %v203, 128
    %242 = vxpose.xlu0.b32.cont [10/16] %v206, 128
    %243 = vxpose.xlu0.b32.cont [11/16] %v211, 128
    %244 = vxpose.xlu0.b32.cont [12/16] %v214, 128
    %245 = vxpose.xlu0.b32.cont [13/16] %v219, 128
    %246 = vxpose.xlu0.b32.cont [14/16] %v222, 128
    %247 = vxpose.xlu0.b32.cont [15/16] %v227, 128
    %248 = vxpose.xlu0.b32.end [16/16] %v230, 128
    %v249 = vpop.trf.xlu0
    %v250 = vpop.trf.xlu0
    %v251 = vpop.trf.xlu0
    %v252 = vpop.trf.xlu0
    %v253 = vpop.trf.xlu0
    %v254 = vpop.trf.xlu0
    %v255 = vpop.trf.xlu0
    %v256 = vpop.trf.xlu0
    %v257 = vpop.trf.xlu0
    %v258 = vpop.trf.xlu0
    %v259 = vpop.trf.xlu0
    %v260 = vpop.trf.xlu0
    %v261 = vpop.trf.xlu0
    %v262 = vpop.trf.xlu0
    %v263 = vpop.trf.xlu0
    %v264 = vpop.trf.xlu0
    %vm265 = vcmp.lt.f32.partialorder %v249, 0.0
    %vm266 = vcmp.lt.f32.partialorder %v250, 0.0
    %vm267 = vcmp.lt.f32.partialorder %v251, 0.0
    %vm268 = vcmp.lt.f32.partialorder %v252, 0.0
    %vm269 = vcmp.lt.f32.partialorder %v253, 0.0
    %vm270 = vcmp.lt.f32.partialorder %v254, 0.0
    %vm271 = vcmp.lt.f32.partialorder %v255, 0.0
    %vm272 = vcmp.lt.f32.partialorder %v256, 0.0
    %vm273 = vmxor %vm265, %vm269
    %vm274 = vmxor %vm266, %vm270
    %vm275 = vmxor %vm267, %vm271
    %vm276 = vmxor %vm268, %vm272
    %v277 = vsel %vm273, 1, 0
    %v278 = vsel %vm274, 1, 0
    %v279 = vsel %vm275, 1, 0
    %v280 = vsel %vm276, 1, 0
    %v281 = vcvt.s32.f32 %v277
    %v282 = vcvt.s32.f32 %v278
    %v283 = vcvt.s32.f32 %v279
    %v284 = vcvt.s32.f32 %v280
    %v285 = vadd.f32 %v281, %v282
    %v286 = vadd.f32 %v285, %v283
    %v287 = vadd.f32 %v286, %v284
    %v288 = vrot.slane %v287, 4
    %v289 = vadd.f32 %v287, %v288
    %v290 = vrot.slane %v289, 2
    %v291 = vadd.f32 %v289, %v290
    %v292 = vrot.slane %v291, 1
    %v293 = vadd.f32 %v291, %v292
    %v294 = vmul.f32 %v293, 2.0
    %v295 = vsub.f32 32.0, %v294
    %296 = vst [vmem:[#allocation2] sm:$0x1] %v295
    // Predicated region
    $region14: #{tpu_custom_call.1} parent=1 // pred_check
      _
    $region15: #{tpu_custom_call.1} parent=1 // pred_check_branch
      %298 = sbr.rel (0) target = $region17
    $region16: #{tpu_custom_call.1} parent=1 // pred_region
      %s300 = ssub.s32 16, 16
      %301 = vsyncadd [#allocation3], %s300
      %s303 = sshll.u32 [#allocation2], 4
      %s304 = int_to_ptr.vmem [resolvable:$true] %s303
      %306 = dma.vmem_to_hbm [thread:$0]  %s304, 16, %s3, [#allocation3]
    $region17: #{tpu_custom_call.1} parent=1 // pred_fallthru
      _
    // Predicated region
    $region18: #{tpu_custom_call.1} parent=1 // pred_check
      _
    $region19: #{tpu_custom_call.1} parent=1 // pred_check_branch
      %308 = sbr.rel (0) target = $region21
    $region20: #{tpu_custom_call.1} parent=1 // pred_region
      %309 = dma.done [#allocation3], 16
    $region21: #{tpu_custom_call.1} parent=1 // pred_fallthru
      _
    %310 = vsyncpa [#allocation3], 1

</llo_original>
